<compile_context>
chip_gen: v7x
topology: tpu7x:2x2x1
jax: 0.10.0
libtpu: 0.0.40
codegen_flags: <defaults>
</compile_context>

<pallas_src>
import functools

import jax
import jax.numpy as jnp
from jax.experimental import pallas as pl
from jax.experimental.pallas import tpu as pltpu


def _round_up(v, m):
    return ((v + m - 1) // m) * m


def _cdiv(a, b):
    return (a + b - 1) // b


def _tpu_defaults():
    """Generation-aware tiling / sharding / VMEM defaults."""
    try:
        kind = jax.devices()[0].device_kind.lower()
    except Exception:
        kind = ""
    if "v7" in kind:
        # 2 TensorCores/chip, 64 MiB VMEM per TC, ~3.2 TB/s HBM per TC.
        return {"tile_bytes": 6 << 20, "num_shards": 2, "vmem_cap": 48 << 20}
    if "v5" in kind or "v6" in kind:
        # Single TensorCore, 128 MiB physical VMEM.
        return {"tile_bytes": 2 << 20, "num_shards": 1, "vmem_cap": 96 << 20}
    # Unknown generation: conservative.
    return {"tile_bytes": 2 << 20, "num_shards": 1, "vmem_cap": 48 << 20}


def _ce_head_kernel(x_ref, w_ref, b_ref, lab_ref, out_ref, loss_acc, cnt_acc):
    """Fused classification-head matmul + streaming single-label CE reduction.

    Grid = (num_shards [parallel], tiles_per_shard [arbitrary]).
    out_ref is one (8, 128) lane-padded tile per shard, written only on the
    last inner step: [0, 0] = sum of per-row losses, [0, 1] = valid count.
    loss_acc / cnt_acc are (tn, 1) VMEM column accumulators updated
    element-wise each step (no per-step cross-row reduction).
    """
    inner = pl.program_id(1)

    @pl.when(inner == 0)
    def _():
        loss_acc[...] = jnp.zeros_like(loss_acc)
        cnt_acc[...] = jnp.zeros_like(cnt_acc)

    x = x_ref[...]            # (TN, H) native dtype (e.g. bf16)
    w = w_ref[...]            # (H, C)  native dtype
    labels = lab_ref[...]     # (TN, 1) int32

    # Classification head: MXU matmul with f32 accumulation; bias add in f32.
    logits = jnp.dot(x, w, preferred_element_type=jnp.float32) + b_ref[...]  # (TN, C)

    # Numerically-stable log-sum-exp per row (f32; EUP exp/log).
    m = jnp.max(logits, axis=-1, keepdims=True)                               # (TN, 1)
    lse = m + jnp.log(jnp.sum(jnp.exp(logits - m), axis=-1, keepdims=True))   # (TN, 1)

    # Target logit via compare+select (no materialized one-hot, no gather).
    class_ids = jax.lax.broadcasted_iota(jnp.int32, logits.shape, 1)          # (TN, C)
    picked = jnp.sum(jnp.where(class_ids == labels, logits, 0.0),
                     axis=-1, keepdims=True)                                  # (TN, 1)
    # NOTE: labels >= num_labels (other than -100) silently yield picked=0.

    # ignore_index = -100 (torch CrossEntropyLoss default).  Garbage rows from
    # partial / clamped x blocks carry label -100, so they are masked here.
    valid = labels != jnp.int32(-100)                                         # (TN, 1)
    per_row = jnp.where(valid, lse - picked, 0.0)                             # (TN, 1)

    # Element-wise (VALU-only) accumulation; single reduction at the end.
    loss_acc[...] = loss_acc[...] + per_row
    cnt_acc[...] = cnt_acc[...] + valid.astype(jnp.float32)

    @pl.when(inner == pl.num_programs(1) - 1)
    def _():
        total = jnp.sum(loss_acc[...])
        count = jnp.sum(cnt_acc[...])
        row = jax.lax.broadcasted_iota(jnp.int32, out_ref.shape, 0)
        col = jax.lax.broadcasted_iota(jnp.int32, out_ref.shape, 1)
        out_ref[...] = (
            jnp.where((row == 0) & (col == 0), total, 0.0)
            + jnp.where((row == 0) & (col == 1), count, 0.0)
        )


@functools.partial(jax.jit, static_argnames=("tn", "shards", "vmem_limit"))
def _pallas_calc_loss(x, w, b, labels, *, tn, shards, vmem_limit):
    n, h = x.shape
    c = w.shape[1]
    labels2d = labels.reshape(n, 1).astype(jnp.int32)
    b2d = b.reshape(1, c).astype(jnp.float32)

    tiles_total = _cdiv(n, tn)
    tiles_per_shard = _cdiv(tiles_total, shards)
    n_pad = shards * tiles_per_shard * tn
    last_xblock = tiles_total - 1

    if n_pad != n:
        # Only the cheap label column is padded (no HBM copy of x).  Padded
        # rows carry ignore_index so any garbage x they pair with is masked.
        labels2d = jnp.pad(labels2d, ((0, n_pad - n), (0, 0)), constant_values=-100)

    if shards * tiles_per_shard == tiles_total:
        def x_map(s, i):
            return (s * tiles_per_shard + i, 0)
    else:
        # Shard rounding created grid steps past the last real x block: clamp
        # the x block index in-bounds; the (unclamped) label block for those
        # steps is all -100, so the re-read rows contribute nothing.
        def x_map(s, i):
            return (jnp.minimum(s * tiles_per_shard + i, last_xblock), 0)

    def lab_map(s, i):
        return (s * tiles_per_shard + i, 0)

    cost = pl.CostEstimate(
        flops=2 * n * h * c,
        transcendentals=n * (c + 1),
        bytes_accessed=(n * h * x.dtype.itemsize + h * c * w.dtype.itemsize
                        + n * 4 + c * 4 + shards * 8 * 128 * 4),
    )

    partial = pl.pallas_call(
        _ce_head_kernel,
        out_shape=jax.ShapeDtypeStruct((shards * 8, 128), jnp.float32),
        grid_spec=pltpu.PrefetchScalarGridSpec(
            num_scalar_prefetch=0,
            grid=(shards, tiles_per_shard),
            in_specs=[
                pl.BlockSpec((tn, h), x_map),              # x (streamed)
                pl.BlockSpec((h, c), lambda s, i: (0, 0)),  # W (resident)
                pl.BlockSpec((1, c), lambda s, i: (0, 0)),  # b (resident)
                pl.BlockSpec((tn, 1), lab_map),             # labels (streamed)
            ],
            out_specs=pl.BlockSpec((8, 128), lambda s, i: (s, 0)),
            scratch_shapes=[
                pltpu.VMEM((tn, 1), jnp.float32),   # per-row loss accumulator
                pltpu.VMEM((tn, 1), jnp.float32),   # per-row valid-count accumulator
            ],
        ),
        compiler_params=pltpu.CompilerParams(
            dimension_semantics=("parallel", "arbitrary"),
            vmem_limit_bytes=vmem_limit,
        ),
        cost_estimate=cost,
    )(x, w, b2d, labels2d)

    total = jnp.sum(partial[:, 0])
    count = jnp.sum(partial[:, 1])
    # NOTE: torch returns NaN when ALL labels are ignore_index; this returns 0.
    loss = total / jnp.maximum(count, 1.0)
    return loss.reshape(1)   # matches `loss.view(1)` in _calc_loss


def pallas_calc_loss(x, w, b, labels, *, tile_rows=None, num_shards=None):
    """Shape-(1,) mean cross-entropy over valid labels (== _calc_loss).

    tile_rows / num_shards default to generation-aware values (byte-budgeted
    tiles; 1 shard on v5e/v6e, 2 on v7x).  Overrides are for testing.
    """
    n, h = x.shape
    c = w.shape[1]
    cfg = _tpu_defaults()
    shards_req = cfg["num_shards"] if num_shards is None else int(num_shards)

    itemsize_x = jnp.dtype(x.dtype).itemsize
    itemsize_w = jnp.dtype(w.dtype).itemsize
    sublane = {4: 8, 2: 16, 1: 32}.get(itemsize_x, 8)

    # Lane/sublane-padded VMEM footprint per row of a tile (x double-buffered,
    # int32 label column, f32 logits/exp intermediates, lane-sparse f32
    # columns, the two (tn,1) scratch accumulators).
    h_lanes = _round_up(h, 128)
    c_lanes = _round_up(c, 128)
    per_row_vmem = (2 * h_lanes * itemsize_x     # x tile, 2 pipeline buffers
                    + 2 * 128 * 4                # labels tile, 2 buffers
                    + 2 * c_lanes * 4            # logits + exp(logits - m) f32
                    + 6 * 128 * 4                # (tn,1) column intermediates + slack
                    + 2 * 128 * 4)               # scratch accumulators
    resident_vmem = (2 * _round_up(h, 16) * c_lanes * itemsize_w   # W
                     + 2 * 8 * c_lanes * 4                         # bias
                     + 2 * 8 * 128 * 4)                            # out tile
    headroom = 2 << 20

    if tile_rows is not None:
        tn = _round_up(max(int(tile_rows), sublane), sublane)
    else:
        tn_bytes = cfg["tile_bytes"] // max(1, h * itemsize_x)          # HBM bytes/tile target
        tn_vmem = max(sublane,
                      (cfg["vmem_cap"] - resident_vmem - headroom) // per_row_vmem)
        tn = max(sublane, (min(tn_bytes, tn_vmem) // sublane) * sublane)
    tn = min(tn, _round_up(n, sublane))
    tn = max(tn, sublane)

    tiles_total = _cdiv(n, tn)
    shards = max(1, min(shards_req, tiles_total))

    vmem_limit = int(resident_vmem + tn * per_row_vmem + headroom)
    vmem_limit = max(4 << 20, min(vmem_limit, cfg["vmem_cap"]))

    return _pallas_calc_loss(x, w, b, labels,
                             tn=int(tn), shards=int(shards), vmem_limit=vmem_limit)


class AttributionMethodWrapPallas:
    """Minimal stand-in for AttributionMethodWrap with the concrete numerics
    (`_calc_loss`) implemented as a fused Pallas TPU kernel.

    The wrapped "model" is a synthetic linear classification head
    (hidden -> num_labels) with deterministically-initialized bf16 parameters.
    """

    def __init__(self, hidden, num_labels, key, *, tile_rows=None, num_shards=None):
        kw, kb = jax.random.split(key)
        self.num_labels = num_labels
        self.problem_type = "single_label_classification"
        self.tile_rows = tile_rows
        self.num_shards = num_shards
        self.w = ((jax.random.normal(kw, (hidden, num_labels), jnp.float32)
                   * (1.0 / jnp.sqrt(hidden))).astype(jnp.bfloat16))
        self.b = jax.random.normal(kb, (num_labels,), jnp.float32) * 0.01

    def model_logits(self, features):
        # Glue only; the matmul is re-done (fused) inside the Pallas kernel.
        return features.astype(jnp.float32) @ self.w.astype(jnp.float32) + self.b

    def _calc_loss(self, labels, features):
        if self.problem_type != "single_label_classification":
            raise NotImplementedError()
        # logits.view(-1, num_labels), labels.view(-1) -> mean CE -> view(1)
        flat_feat = features.reshape(-1, features.shape[-1])
        flat_lab = labels.reshape(-1)
        return pallas_calc_loss(flat_feat, self.w, self.b, flat_lab,
                                tile_rows=self.tile_rows,
                                num_shards=self.num_shards)

    # attribute()/captum integration and abstract forward/_prepare_inputs are
    # framework plumbing around a third-party library, not tensor compute.
    # TODO(synk): captum `.attribute` call graph has no Pallas equivalent.


def _reference_loss(features, w, b, labels):
    logits = (features.astype(jnp.float32) @ w.astype(jnp.float32)
              + b.astype(jnp.float32))
    lse = jax.scipy.special.logsumexp(logits, axis=-1)
    safe = jnp.where(labels == -100, 0, labels)
    picked = jnp.take_along_axis(logits, safe[:, None], axis=-1)[:, 0]
    per_row = lse - picked
    valid = (labels != -100).astype(jnp.float32)
    return (jnp.sum(per_row * valid) / jnp.maximum(jnp.sum(valid), 1.0)).reshape(1)


if __name__ == "__main__":
    key = jax.random.PRNGKey(0)
    k_feat, k_lab, k_params, k_feat2, k_lab2 = jax.random.split(key, 5)

    batch, hidden, num_labels = 64, 32, 4   # small shapes implied by the head

    # bf16 activations fed straight to the MXU (no wrapper-side f32 cast).
    features = jax.random.normal(k_feat, (batch, hidden), jnp.float32).astype(jnp.bfloat16)
    labels = jax.random.randint(k_lab, (batch,), 0, num_labels, jnp.int32)
    labels = labels.at[::7].set(-100)       # exercise ignore_index

    wrap = AttributionMethodWrapPallas(hidden, num_labels, k_params)

    # 1) Generation-aware defaults (byte-budgeted tile; 1 or 2 shards).
    loss = wrap._calc_loss(labels, features)
    jax.block_until_ready(loss)
    ref = _reference_loss(features, wrap.w, wrap.b, labels)
    assert loss.shape == (1,)
    assert jnp.allclose(loss, ref, rtol=1e-4, atol=1e-5), (loss, ref)

    # 2) Forced small tiles + 2 shards: multi-tile accumulation + shard axis.
    loss_t = pallas_calc_loss(features, wrap.w, wrap.b, labels,
                              tile_rows=16, num_shards=2)
    jax.block_until_ready(loss_t)
    assert jnp.allclose(loss_t, ref, rtol=1e-4, atol=1e-5), (loss_t, ref)

    # 3) Ragged N with forced tiles/shards: exercises the no-x-pad path with a
    #    partially-filled last block AND a clamped fully-out-of-bounds block
    #    (37 rows, tn=16, 2 shards -> 4 grid steps over 3 real x blocks).
    n2 = 37
    feats2 = jax.random.normal(k_feat2, (n2, hidden), jnp.float32).astype(jnp.bfloat16)
    labs2 = jax.random.randint(k_lab2, (n2,), 0, num_labels, jnp.int32)
    ref2 = _reference_loss(feats2, wrap.w, wrap.b, labs2)
    loss2 = pallas_calc_loss(feats2, wrap.w, wrap.b, labs2,
                             tile_rows=16, num_shards=2)
    jax.block_until_ready(loss2)
    assert jnp.allclose(loss2, ref2, rtol=1e-4, atol=1e-5), (loss2, ref2)

    # 4) Ragged N with default config (single partial tile, label-mask tail).
    loss3 = wrap._calc_loss(labs2, feats2)
    jax.block_until_ready(loss3)
    assert jnp.allclose(loss3, ref2, rtol=1e-4, atol=1e-5), (loss3, ref2)

    print("KERNEL_OK")
</pallas_src>

<mosaic_0001>
module attributes {stable_mosaic.version = 11 : i64} {
  func.func @_ce_head_kernel(%arg0: i32, %arg1: i32, %arg2: memref<64x32xbf16, #tpu.memory_space<vmem>>, %arg3: memref<32x4xbf16, #tpu.memory_space<vmem>>, %arg4: memref<1x4xf32, #tpu.memory_space<vmem>>, %arg5: memref<64x1xi32, #tpu.memory_space<vmem>>, %arg6: memref<8x128xf32, #tpu.memory_space<vmem>>, %arg7: memref<64x1xf32, #tpu.memory_space<vmem>>, %arg8: memref<64x1xf32, #tpu.memory_space<vmem>>) attributes {dimension_semantics = [#tpu.dimension_semantics<parallel>, #tpu.dimension_semantics<arbitrary>], iteration_bounds = array<i64: 1, 1>, scalar_prefetch = 0 : i64, scratch_operands = 2 : i64, tpu.core_type = #tpu.core_type<tc>, window_params = [{transform_indices = @transform_0, window_bounds = array<i64: 64, 32>}, {pipeline_mode = #tpu.pipeline_mode<synchronous>, transform_indices = @transform_1, window_bounds = array<i64: 32, 4>}, {pipeline_mode = #tpu.pipeline_mode<synchronous>, transform_indices = @transform_2, window_bounds = array<i64: 1, 4>}, {transform_indices = @transform_3, window_bounds = array<i64: 64, 1>}, {transform_indices = @transform_4, window_bounds = array<i64: 8, 128>}]} {
    %c0_i32 = arith.constant 0 : i32
    %0 = arith.cmpi eq, %arg1, %c0_i32 : i32
    %1 = arith.extui %0 : i1 to i32
    %c0_i32_0 = arith.constant 0 : i32
    %2 = arith.cmpi ne, %1, %c0_i32_0 : i32
    scf.if %2 {
      %cst_23 = arith.constant 0.000000e+00 : f32
      %42 = vector.broadcast %cst_23 : f32 to vector<64x1xf32>
      %c0_24 = arith.constant 0 : index
      %c0_25 = arith.constant 0 : index
      %43 = vector.load %arg7[%c0_24, %c0_25] : memref<64x1xf32, #tpu.memory_space<vmem>>, vector<64x1xf32>
      tpu.vector_store %arg7[%c0_24, %c0_25], %42 {strides = array<i32>} : memref<64x1xf32, #tpu.memory_space<vmem>>, vector<64x1xf32>,
      %cst_26 = arith.constant 0.000000e+00 : f32
      %44 = vector.broadcast %cst_26 : f32 to vector<64x1xf32>
      %c0_27 = arith.constant 0 : index
      %c0_28 = arith.constant 0 : index
      %45 = vector.load %arg8[%c0_27, %c0_28] : memref<64x1xf32, #tpu.memory_space<vmem>>, vector<64x1xf32>
      tpu.vector_store %arg8[%c0_27, %c0_28], %44 {strides = array<i32>} : memref<64x1xf32, #tpu.memory_space<vmem>>, vector<64x1xf32>,
    } else {
    }
    %c0 = arith.constant 0 : index
    %c0_1 = arith.constant 0 : index
    %3 = vector.load %arg2[%c0, %c0_1] : memref<64x32xbf16, #tpu.memory_space<vmem>>, vector<64x32xbf16>
    %c0_2 = arith.constant 0 : index
    %c0_3 = arith.constant 0 : index
    %4 = vector.load %arg3[%c0_2, %c0_3] : memref<32x4xbf16, #tpu.memory_space<vmem>>, vector<32x4xbf16>
    %c0_4 = arith.constant 0 : index
    %c0_5 = arith.constant 0 : index
    %5 = vector.load %arg5[%c0_4, %c0_5] : memref<64x1xi32, #tpu.memory_space<vmem>>, vector<64x1xi32>
    %cst = arith.constant dense<0.000000e+00> : vector<64x4xf32>
    %6 = tpu.matmul %3, %4, %cst {dimension_numbers = #tpu.dot_dimension_numbers<[1], [0], [0], [1], [0, 0, 1, 1], [], []>} : vector<64x32xbf16>, vector<32x4xbf16>, vector<64x4xf32> -> vector<64x4xf32>
    %c0_6 = arith.constant 0 : index
    %c0_7 = arith.constant 0 : index
    %7 = vector.load %arg4[%c0_6, %c0_7] : memref<1x4xf32, #tpu.memory_space<vmem>>, vector<1x4xf32>
    %8 = vector.broadcast %7 : vector<1x4xf32> to vector<64x4xf32>
    %9 = arith.addf %6, %8 : vector<64x4xf32>
    %cst_8 = arith.constant dense<0xFF800000> : vector<64xf32>
    %10 = vector.multi_reduction <maximumf>, %9, %cst_8 [1] : vector<64x4xf32> to vector<64xf32>
    %11 = vector.shape_cast %10 : vector<64xf32> to vector<64x1xf32>
    %12 = vector.broadcast %11 : vector<64x1xf32> to vector<64x4xf32>
    %13 = arith.subf %9, %12 : vector<64x4xf32>
    %14 = math.exp %13 : vector<64x4xf32>
    %cst_9 = arith.constant dense<0.000000e+00> : vector<64xf32>
    %15 = vector.multi_reduction <add>, %14, %cst_9 [1] : vector<64x4xf32> to vector<64xf32>
    %16 = vector.shape_cast %15 : vector<64xf32> to vector<64x1xf32>
    %17 = math.log %16 : vector<64x1xf32>
    %18 = arith.addf %11, %17 : vector<64x1xf32>
    %19 = tpu.iota {dimensions = array<i32: 1>} : vector<64x4xi32>
    %20 = vector.broadcast %5 : vector<64x1xi32> to vector<64x4xi32>
    %21 = arith.cmpi eq, %19, %20 : vector<64x4xi32>
    %cst_10 = arith.constant 0.000000e+00 : f32
    %22 = vector.broadcast %cst_10 : f32 to vector<64x4xf32>
    %23 = arith.select %21, %9, %22 : vector<64x4xi1>, vector<64x4xf32>
    %cst_11 = arith.constant dense<0.000000e+00> : vector<64xf32>
    %24 = vector.multi_reduction <add>, %23, %cst_11 [1] : vector<64x4xf32> to vector<64xf32>
    %25 = vector.shape_cast %24 : vector<64xf32> to vector<64x1xf32>
    %c-100_i32 = arith.constant -100 : i32
    %26 = vector.broadcast %c-100_i32 : i32 to vector<64x1xi32>
    %27 = arith.cmpi ne, %5, %26 : vector<64x1xi32>
    %28 = arith.subf %18, %25 : vector<64x1xf32>
    %cst_12 = arith.constant 0.000000e+00 : f32
    %29 = vector.broadcast %cst_12 : f32 to vector<64x1xf32>
    %30 = arith.select %27, %28, %29 : vector<64x1xi1>, vector<64x1xf32>
    %c0_13 = arith.constant 0 : index
    %c0_14 = arith.constant 0 : index
    %31 = vector.load %arg7[%c0_13, %c0_14] : memref<64x1xf32, #tpu.memory_space<vmem>>, vector<64x1xf32>
    %32 = arith.addf %31, %30 : vector<64x1xf32>
    %c0_15 = arith.constant 0 : index
    %c0_16 = arith.constant 0 : index
    %33 = vector.load %arg7[%c0_15, %c0_16] : memref<64x1xf32, #tpu.memory_space<vmem>>, vector<64x1xf32>
    tpu.vector_store %arg7[%c0_15, %c0_16], %32 {strides = array<i32>} : memref<64x1xf32, #tpu.memory_space<vmem>>, vector<64x1xf32>,
    %c0_17 = arith.constant 0 : index
    %c0_18 = arith.constant 0 : index
    %34 = vector.load %arg8[%c0_17, %c0_18] : memref<64x1xf32, #tpu.memory_space<vmem>>, vector<64x1xf32>
    %35 = arith.extui %27 : vector<64x1xi1> to vector<64x1xi32>
    %36 = arith.sitofp %35 : vector<64x1xi32> to vector<64x1xf32>
    %37 = arith.addf %34, %36 : vector<64x1xf32>
    %c0_19 = arith.constant 0 : index
    %c0_20 = arith.constant 0 : index
    %38 = vector.load %arg8[%c0_19, %c0_20] : memref<64x1xf32, #tpu.memory_space<vmem>>, vector<64x1xf32>
    tpu.vector_store %arg8[%c0_19, %c0_20], %37 {strides = array<i32>} : memref<64x1xf32, #tpu.memory_space<vmem>>, vector<64x1xf32>,
    %c0_i32_21 = arith.constant 0 : i32
    %39 = arith.cmpi eq, %arg1, %c0_i32_21 : i32
    %40 = arith.extui %39 : i1 to i32
    %c0_i32_22 = arith.constant 0 : i32
    %41 = arith.cmpi ne, %40, %c0_i32_22 : i32
    scf.if %41 {
      %c0_23 = arith.constant 0 : index
      %c0_24 = arith.constant 0 : index
      %42 = vector.load %arg7[%c0_23, %c0_24] : memref<64x1xf32, #tpu.memory_space<vmem>>, vector<64x1xf32>
      %43 = vector.shape_cast %42 : vector<64x1xf32> to vector<1x64x1xf32>
      %cst_25 = arith.constant dense<0.000000e+00> : vector<1xf32>
      %44 = vector.multi_reduction <add>, %43, %cst_25 [1, 2] : vector<1x64x1xf32> to vector<1xf32>
      %45 = vector.shape_cast %44 : vector<1xf32> to vector<1x1x1xf32>
      %46 = vector.extract %45[0, 0, 0] : f32 from vector<1x1x1xf32>
      %c0_26 = arith.constant 0 : index
      %c0_27 = arith.constant 0 : index
      %47 = vector.load %arg8[%c0_26, %c0_27] : memref<64x1xf32, #tpu.memory_space<vmem>>, vector<64x1xf32>
      %48 = vector.shape_cast %47 : vector<64x1xf32> to vector<1x64x1xf32>
      %cst_28 = arith.constant dense<0.000000e+00> : vector<1xf32>
      %49 = vector.multi_reduction <add>, %48, %cst_28 [1, 2] : vector<1x64x1xf32> to vector<1xf32>
      %50 = vector.shape_cast %49 : vector<1xf32> to vector<1x1x1xf32>
      %51 = vector.extract %50[0, 0, 0] : f32 from vector<1x1x1xf32>
      %52 = tpu.iota {dimensions = array<i32: 0>} : vector<8x128xi32>
      %53 = tpu.iota {dimensions = array<i32: 1>} : vector<8x128xi32>
      %c0_i32_29 = arith.constant 0 : i32
      %54 = vector.broadcast %c0_i32_29 : i32 to vector<8x128xi32>
      %55 = arith.cmpi eq, %52, %54 : vector<8x128xi32>
      %c0_i32_30 = arith.constant 0 : i32
      %56 = vector.broadcast %c0_i32_30 : i32 to vector<8x128xi32>
      %57 = arith.cmpi eq, %53, %56 : vector<8x128xi32>
      %58 = arith.andi %55, %57 : vector<8x128xi1>
      %cst_31 = arith.constant 0.000000e+00 : f32
      %59 = vector.broadcast %46 : f32 to vector<8x128xf32>
      %60 = vector.broadcast %cst_31 : f32 to vector<8x128xf32>
      %61 = arith.select %58, %59, %60 : vector<8x128xi1>, vector<8x128xf32>
      %c0_i32_32 = arith.constant 0 : i32
      %62 = vector.broadcast %c0_i32_32 : i32 to vector<8x128xi32>
      %63 = arith.cmpi eq, %52, %62 : vector<8x128xi32>
      %c1_i32 = arith.constant 1 : i32
      %64 = vector.broadcast %c1_i32 : i32 to vector<8x128xi32>
      %65 = arith.cmpi eq, %53, %64 : vector<8x128xi32>
      %66 = arith.andi %63, %65 : vector<8x128xi1>
      %cst_33 = arith.constant 0.000000e+00 : f32
      %67 = vector.broadcast %51 : f32 to vector<8x128xf32>
      %68 = vector.broadcast %cst_33 : f32 to vector<8x128xf32>
      %69 = arith.select %66, %67, %68 : vector<8x128xi1>, vector<8x128xf32>
      %70 = arith.addf %61, %69 : vector<8x128xf32>
      %c0_34 = arith.constant 0 : index
      %c0_35 = arith.constant 0 : index
      %71 = vector.load %arg6[%c0_34, %c0_35] : memref<8x128xf32, #tpu.memory_space<vmem>>, vector<8x128xf32>
      tpu.vector_store %arg6[%c0_34, %c0_35], %70 {strides = array<i32>} : memref<8x128xf32, #tpu.memory_space<vmem>>, vector<8x128xf32>,
    } else {
    }
    return
  }
  func.func @transform_0(%arg0: i32, %arg1: i32) -> (i32, i32) {
    %c1_i32 = arith.constant 1 : i32
    %0 = arith.muli %arg0, %c1_i32 : i32
    %1 = arith.addi %0, %arg1 : i32
    %c0_i32 = arith.constant 0 : i32
    %c0_i32_0 = arith.constant 0 : i32
    return %1, %c0_i32 : i32, i32
  }
  func.func @transform_1(%arg0: i32, %arg1: i32) -> (i32, i32) {
    %c0_i32 = arith.constant 0 : i32
    %c0_i32_0 = arith.constant 0 : i32
    %c0_i32_1 = arith.constant 0 : i32
    return %c0_i32, %c0_i32_0 : i32, i32
  }
  func.func @transform_2(%arg0: i32, %arg1: i32) -> (i32, i32) {
    %c0_i32 = arith.constant 0 : i32
    %c0_i32_0 = arith.constant 0 : i32
    %c0_i32_1 = arith.constant 0 : i32
    return %c0_i32, %c0_i32_0 : i32, i32
  }
  func.func @transform_3(%arg0: i32, %arg1: i32) -> (i32, i32) {
    %c1_i32 = arith.constant 1 : i32
    %0 = arith.muli %arg0, %c1_i32 : i32
    %1 = arith.addi %0, %arg1 : i32
    %c0_i32 = arith.constant 0 : i32
    %c0_i32_0 = arith.constant 0 : i32
    return %1, %c0_i32 : i32, i32
  }
  func.func @transform_4(%arg0: i32, %arg1: i32) -> (i32, i32) {
    %c0_i32 = arith.constant 0 : i32
    %c0_i32_0 = arith.constant 0 : i32
    return %arg0, %c0_i32 : i32, i32
  }
}

</mosaic_0001>

<llo_original>
// kernel: _pallas_calc_loss.1
$region0: #{_pallas_calc_loss.1}
  #allocation0 [shape = 'u32[]', space=smem, size = 0x4, offset = 0x4, fixed_abs, tag = 'smem constant byte address 0x4 - core index']
  #allocation1 [shape = 'u32[144,128]{1,0:T(1,128)}', space=vmem, size = 0x12000, scoped, tag = 'internal scratch']
  #allocation2 [shape = 'f32[64,1]{1,0:T(8,128)}', space=vmem, size = 0x8000, scoped, tag = 'scratch operand']
  #allocation3 [shape = 'f32[64,1]{1,0:T(8,128)}', space=vmem, size = 0x8000, scoped, tag = 'scratch operand']
  %s0 = inlined_call_operand.vmem [shape: bf16[64,32], index: 0, kind: input, shape index: {}]
  %s1 = inlined_call_operand.vmem [shape: bf16[32,4], index: 1, kind: input, shape index: {}]
  %s2 = inlined_call_operand.vmem [shape: f32[1,4], index: 2, kind: input, shape index: {}]
  %s3 = inlined_call_operand.vmem [shape: s32[64,1], index: 3, kind: input, shape index: {}]
  %s4 = inlined_call_operand.vmem [shape: f32[8,128], index: 4, kind: output, shape index: {}]
  %s5 = sld [smem:[#allocation0]]
  $region34: #{_pallas_calc_loss.1} parent=0
    _
  %s7 = ssub.s32 1, %s5
  %s8 = scalar_select 0, %s7, %s5
  // Predicated region
  $region2: #{_pallas_calc_loss.1} parent=0 // pred_check
    _
  $region3: #{_pallas_calc_loss.1} parent=0 // pred_check_branch
    %10 = sbr.rel (0) target = $region5
  $region4: #{_pallas_calc_loss.1} parent=0 // pred_region
    %s11 = sadd.s32 0, 0
    %s12 = smul.u32 8, %s11
    %p13 = scmp.lt.s32.totalorder %s12, 7
    %s14 = scalar_select %p13, %s12, 7
    %s15 = smul.addr %s14, 4
    %s16 = scalar_lea.vmem %s0, %s15
    %s17 = sadd.s32 0, 0
    %s18 = smul.u32 8, %s17
  $region5: #{_pallas_calc_loss.1} parent=0 // pred_fallthru
    _
  // Predicated region
  $region6: #{_pallas_calc_loss.1} parent=0 // pred_check
    _
  $region7: #{_pallas_calc_loss.1} parent=0 // pred_check_branch
    %20 = sbr.rel (0) target = $region9
  $region8: #{_pallas_calc_loss.1} parent=0 // pred_region
    _
  $region9: #{_pallas_calc_loss.1} parent=0 // pred_fallthru
    _
  // Predicated region
  $region10: #{_pallas_calc_loss.1} parent=0 // pred_check
    _
  $region11: #{_pallas_calc_loss.1} parent=0 // pred_check_branch
    %22 = sbr.rel (0) target = $region13
  $region12: #{_pallas_calc_loss.1} parent=0 // pred_region
    _
  $region13: #{_pallas_calc_loss.1} parent=0 // pred_fallthru
    _
  // Predicated region
  $region14: #{_pallas_calc_loss.1} parent=0 // pred_check
    _
  $region15: #{_pallas_calc_loss.1} parent=0 // pred_check_branch
    %24 = sbr.rel (0) target = $region17
  $region16: #{_pallas_calc_loss.1} parent=0 // pred_region
    %s25 = sadd.s32 0, 0
    %s26 = smul.u32 8, %s25
    %p27 = scmp.lt.s32.totalorder %s26, 7
    %s28 = scalar_select %p27, %s26, 7
    %s29 = smul.addr %s28, 8
    %s30 = scalar_lea.vmem %s3, %s29
    %s31 = sadd.s32 0, 0
    %s32 = smul.u32 8, %s31
  $region17: #{_pallas_calc_loss.1} parent=0 // pred_fallthru
    _
  %s33 = sadd.s32 0, 0
  %s34 = smul.u32 8, %s33
  %p35 = scmp.lt.s32.totalorder %s34, 7
  %s36 = scalar_select %p35, %s34, 7
  %s37 = smul.addr %s36, 4
  %s38 = scalar_lea.vmem %s0, %s37
  %s39 = sadd.s32 0, 0
  %s40 = smul.u32 8, %s39
  %p41 = scmp.lt.s32.totalorder %s40, 7
  %s42 = scalar_select %p41, %s40, 7
  %s43 = smul.addr %s42, 8
  %s44 = scalar_lea.vmem %s3, %s43
  %s45 = sadd.s32 0, 0
  %s46 = smul.u32 8, %s45
  %p47 = scmp.lt.s32.totalorder %s46, 7
  %s48 = scalar_select %p47, %s46, 7
  %s49 = smul.addr %s48, 4
  %s50 = scalar_lea.vmem %s0, %s49
  %s51 = sadd.s32 0, 0
  %s52 = smul.u32 8, %s51
  %s53 = sadd.s32 0, 0
  %s54 = smul.u32 8, %s53
  %p55 = scmp.lt.s32.totalorder %s54, 7
  %s56 = scalar_select %p55, %s54, 7
  %s57 = smul.addr %s56, 8
  %s58 = scalar_lea.vmem %s3, %s57
  %s59 = sadd.s32 0, 0
  %s60 = smul.u32 8, %s59
  %p62 = scmp.eq.s32.totalorder 0, 0
  // Predicated region
  $region18: #{_pallas_calc_loss.1} parent=0 // pred_check
    %p63 = pneg %p62
  $region19: #{_pallas_calc_loss.1} parent=0 // pred_check_branch
    %65 = sbr.rel (%p63) target = $region21
  $region20: #{_pallas_calc_loss.1} parent=0 // pred_region
    %vm66 = vcmask 7168
    %67 = vst.msk [vmem:[#allocation2] sm:$0xff] %vm66, 0.0
    %68 = vst.msk [vmem:[#allocation2 + $0x8] sm:$0xff] %vm66, 0.0
    %69 = vst.msk [vmem:[#allocation2 + $0x10] sm:$0xff] %vm66, 0.0
    %70 = vst.msk [vmem:[#allocation2 + $0x18] sm:$0xff] %vm66, 0.0
    %71 = vst.msk [vmem:[#allocation2 + $0x20] sm:$0xff] %vm66, 0.0
    %72 = vst.msk [vmem:[#allocation2 + $0x28] sm:$0xff] %vm66, 0.0
    %73 = vst.msk [vmem:[#allocation2 + $0x30] sm:$0xff] %vm66, 0.0
    %74 = vst.msk [vmem:[#allocation2 + $0x38] sm:$0xff] %vm66, 0.0
    %75 = vst.msk [vmem:[#allocation3] sm:$0xff] %vm66, 0.0
    %76 = vst.msk [vmem:[#allocation3 + $0x8] sm:$0xff] %vm66, 0.0
    %77 = vst.msk [vmem:[#allocation3 + $0x10] sm:$0xff] %vm66, 0.0
    %78 = vst.msk [vmem:[#allocation3 + $0x18] sm:$0xff] %vm66, 0.0
    %79 = vst.msk [vmem:[#allocation3 + $0x20] sm:$0xff] %vm66, 0.0
    %80 = vst.msk [vmem:[#allocation3 + $0x28] sm:$0xff] %vm66, 0.0
    %81 = vst.msk [vmem:[#allocation3 + $0x30] sm:$0xff] %vm66, 0.0
    %82 = vst.msk [vmem:[#allocation3 + $0x38] sm:$0xff] %vm66, 0.0
  $region21: #{_pallas_calc_loss.1} parent=0 // pred_fallthru
    _
  %v83 = vld [vmem:[%s50] sm:$0xf]
  %v84 = vld [vmem:[%s50 + $0x4] sm:$0xf]
  %v85 = vld [vmem:[%s50 + $0x8] sm:$0xf]
  %v86 = vld [vmem:[%s50 + $0xc] sm:$0xf]
  %v87 = vld [vmem:[%s50 + $0x10] sm:$0xf]
  %v88 = vld [vmem:[%s50 + $0x14] sm:$0xf]
  %v89 = vld [vmem:[%s50 + $0x18] sm:$0xf]
  %v90 = vld [vmem:[%s50 + $0x1c] sm:$0xf]
  %v91 = vld [vmem:[%s1] sm:$0xf]
  %v92 = vld [vmem:[%s1 + $0x4] sm:$0xf]
  %v93 = vld [vmem:[%s1 + $0x8] sm:$0xf]
  %v94 = vld [vmem:[%s1 + $0xc] sm:$0xf]
  %v95 = vld [vmem:[%s58] sm:$0xff]
  %v96 = vld [vmem:[%s58 + $0x8] sm:$0xff]
  %v97 = vld [vmem:[%s58 + $0x10] sm:$0xff]
  %v98 = vld [vmem:[%s58 + $0x18] sm:$0xff]
  %v99 = vld [vmem:[%s58 + $0x20] sm:$0xff]
  %v100 = vld [vmem:[%s58 + $0x28] sm:$0xff]
  %v101 = vld [vmem:[%s58 + $0x30] sm:$0xff]
  %v102 = vld [vmem:[%s58 + $0x38] sm:$0xff]
  %v103 = vld [vmem:[%s2] sm:$0x1]
  %v105 = vlaneseq
  %v106 = vshrl.u32 %v105, 7
  %v107 = vsub.s32 0, %v106
  %v108 = vrot.slane %v103, %v107
  %v118 = vunpack.c.l.b16 %v83
  %v119 = vunpack.c.l.b16 %v84
  %v120 = vunpack.c.l.b16 %v85
  %v121 = vunpack.c.l.b16 %v86
  %v122 = vunpack.c.l.b16 %v87
  %v123 = vunpack.c.l.b16 %v88
  %v124 = vunpack.c.l.b16 %v89
  %v125 = vunpack.c.l.b16 %v90
  %v126 = vpack.c.b16 %v119, %v118
  %v127 = vpack.c.b16 %v121, %v120
  %v128 = vpack.c.b16 %v123, %v122
  %v129 = vpack.c.b16 %v125, %v124
  %v134 = vunpack.c.l.b16 %v91
  %v135 = vunpack.c.l.b16 %v92
  %v136 = vunpack.c.l.b16 %v93
  %v137 = vunpack.c.l.b16 %v94
  %v138 = vpack.c.b16 %v135, %v134
  %v139 = vpack.c.b16 %v137, %v136
  %vm142 = vcmask 261120
  %v144 = vsel %vm142, %v126, 0
  %v147 = vsel %vm142, %v127, 0
  %v150 = vsel %vm142, %v128, 0
  %v153 = vsel %vm142, %v129, 0
  %155 = vmatprep.subr.bf16.mxu0 0
  %156 = vmatpush1.bf16.msra.mxu0 %v138
  %157 = vmatprep.subr.bf16.mxu0 0
  %158 = vmatpush1.bf16.msra.mxu0 %v139
  %159 = vmatprep.subr.bf16.mxu0 0
  %160 = vmatpush1.bf16.msra.mxu0 0
  %161 = vmatprep.subr.bf16.mxu0 0
  %162 = vmatpush1.bf16.msra.mxu0 0
  %163 = vmatprep.subr.bf16.mxu0 0
  %164 = vmatpush1.bf16.msra.mxu0 0
  %165 = vmatprep.subr.bf16.mxu0 0
  %166 = vmatpush1.bf16.msra.mxu0 0
  %167 = vmatprep.subr.bf16.mxu0 0
  %168 = vmatpush1.bf16.msra.mxu0 0
  %169 = vmatprep.subr.bf16.mxu0 0
  %170 = vmatpush1.bf16.msra.mxu0 0
  %171 = vmatprep.subr.bf16.mxu0 0
  %172 = vmatpush1.bf16.msra.mxu0 0
  %173 = vmatprep.subr.bf16.mxu0 0
  %174 = vmatpush1.bf16.msra.mxu0 0
  %175 = vmatprep.subr.bf16.mxu0 0
  %176 = vmatpush1.bf16.msra.mxu0 0
  %177 = vmatprep.subr.bf16.mxu0 0
  %178 = vmatpush1.bf16.msra.mxu0 0
  %179 = vmatprep.subr.bf16.mxu0 0
  %180 = vmatpush1.bf16.msra.mxu0 0
  %181 = vmatprep.subr.bf16.mxu0 0
  %182 = vmatpush1.bf16.msra.mxu0 0
  %183 = vmatprep.subr.bf16.mxu0 0
  %184 = vmatpush1.bf16.msra.mxu0 0
  %185 = vmatprep.subr.bf16.mxu0 0
  %186 = vmatpush1.bf16.msra.mxu0 0
  %187 = vmatprep.mubr.bf16.mxu0 0
  %188 = vmatmul.mubr.bf16.gmra.mrb[0].mxu0 %v144
  %v189 = vpop.f32.mrb[0].mxu0
  %v190 = vadd.f32 %v108, %v189
  %v191 = vpop.f32.mrb[0].mxu0
  %v192 = vpop.f32.mrb[0].mxu0
  %v193 = vadd.f32 %v108, %v192
  %v194 = vpop.f32.mrb[0].mxu0
  %195 = vmatprep.mubr.bf16.mxu0 0
  %196 = vmatmul.mubr.bf16.gmra.mrb[0].mxu0 %v147
  %v197 = vpop.f32.mrb[0].mxu0
  %v198 = vadd.f32 %v108, %v197
  %v199 = vpop.f32.mrb[0].mxu0
  %v200 = vpop.f32.mrb[0].mxu0
  %v201 = vadd.f32 %v108, %v200
  %v202 = vpop.f32.mrb[0].mxu0
  %203 = vmatprep.mubr.bf16.mxu0 0
  %204 = vmatmul.mubr.bf16.gmra.mrb[0].mxu0 %v150
  %v205 = vpop.f32.mrb[0].mxu0
  %v206 = vadd.f32 %v108, %v205
  %v207 = vpop.f32.mrb[0].mxu0
  %v208 = vpop.f32.mrb[0].mxu0
  %v209 = vadd.f32 %v108, %v208
  %v210 = vpop.f32.mrb[0].mxu0
  %211 = vmatprep.mubr.bf16.mxu0 0
  %212 = vmatmul.mubr.bf16.gmra.mrb[0].mxu0 %v153
  %v213 = vpop.f32.mrb[0].mxu0
  %v214 = vadd.f32 %v108, %v213
  %v215 = vpop.f32.mrb[0].mxu0
  %v216 = vpop.f32.mrb[0].mxu0
  %v217 = vadd.f32 %v108, %v216
  %v218 = vpop.f32.mrb[0].mxu0
  %219 = vdwg.mxu0
  %vm220 = vcmask 31744
  %v221 = vsel %vm220, %v190, -inf
  %222 = vmax.xlane.f32.xlu0 %v221
  %v223 = vpop.xlane.xlu0 %222
  %v224 = vsel %vm220, %v193, -inf
  %225 = vmax.xlane.f32.xlu0 %v224
  %v226 = vpop.xlane.xlu0 %225
  %v227 = vsel %vm220, %v198, -inf
  %228 = vmax.xlane.f32.xlu0 %v227
  %v229 = vpop.xlane.xlu0 %228
  %v230 = vsel %vm220, %v201, -inf
  %231 = vmax.xlane.f32.xlu0 %v230
  %v232 = vpop.xlane.xlu0 %231
  %v233 = vsel %vm220, %v206, -inf
  %234 = vmax.xlane.f32.xlu0 %v233
  %v235 = vpop.xlane.xlu0 %234
  %v236 = vsel %vm220, %v209, -inf
  %237 = vmax.xlane.f32.xlu0 %v236
  %v238 = vpop.xlane.xlu0 %237
  %v239 = vsel %vm220, %v214, -inf
  %240 = vmax.xlane.f32.xlu0 %v239
  %v241 = vpop.xlane.xlu0 %240
  %v242 = vsel %vm220, %v217, -inf
  %243 = vmax.xlane.f32.xlu0 %v242
  %v244 = vpop.xlane.xlu0 %243
  %v245 = vsub.f32 %v190, %v223
  %v246 = vsub.f32 %v193, %v226
  %v247 = vsub.f32 %v198, %v229
  %v248 = vsub.f32 %v201, %v232
  %v249 = vsub.f32 %v206, %v235
  %v250 = vsub.f32 %v209, %v238
  %v251 = vsub.f32 %v214, %v241
  %v252 = vsub.f32 %v217, %v244
  %v253 = vmul.f32 %v245, 1.442695
  %v254 = vpow.pop %v253
  %v255 = vmul.f32 %v246, 1.442695
  %v256 = vpow.pop %v255
  %v257 = vmul.f32 %v247, 1.442695
  %v258 = vpow.pop %v257
  %v259 = vmul.f32 %v248, 1.442695
  %v260 = vpow.pop %v259
  %v261 = vmul.f32 %v249, 1.442695
  %v262 = vpow.pop %v261
  %v263 = vmul.f32 %v250, 1.442695
  %v264 = vpow.pop %v263
  %v265 = vmul.f32 %v251, 1.442695
  %v266 = vpow.pop %v265
  %v267 = vmul.f32 %v252, 1.442695
  %v268 = vpow.pop %v267
  %v269 = vsel %vm220, %v254, 0.0
  %270 = vadd.xlane.f32.xlu0 %v269
  %v271 = vpop.xlane.xlu0 %270
  %v272 = vsel %vm220, %v256, 0.0
  %273 = vadd.xlane.f32.xlu0 %v272
  %v274 = vpop.xlane.xlu0 %273
  %v275 = vsel %vm220, %v258, 0.0
  %276 = vadd.xlane.f32.xlu0 %v275
  %v277 = vpop.xlane.xlu0 %276
  %v278 = vsel %vm220, %v260, 0.0
  %279 = vadd.xlane.f32.xlu0 %v278
  %v280 = vpop.xlane.xlu0 %279
  %v281 = vsel %vm220, %v262, 0.0
  %282 = vadd.xlane.f32.xlu0 %v281
  %v283 = vpop.xlane.xlu0 %282
  %v284 = vsel %vm220, %v264, 0.0
  %285 = vadd.xlane.f32.xlu0 %v284
  %v286 = vpop.xlane.xlu0 %285
  %v287 = vsel %vm220, %v266, 0.0
  %288 = vadd.xlane.f32.xlu0 %v287
  %v289 = vpop.xlane.xlu0 %288
  %v290 = vsel %vm220, %v268, 0.0
  %291 = vadd.xlane.f32.xlu0 %v290
  %v292 = vpop.xlane.xlu0 %291
  %v293 = vlog2.pop %v271
  %v294 = vmul.f32 %v293, 0.6931472
  %v295 = vlog2.pop %v274
  %v296 = vmul.f32 %v295, 0.6931472
  %v297 = vlog2.pop %v277
  %v298 = vmul.f32 %v297, 0.6931472
  %v299 = vlog2.pop %v280
  %v300 = vmul.f32 %v299, 0.6931472
  %v301 = vlog2.pop %v283
  %v302 = vmul.f32 %v301, 0.6931472
  %v303 = vlog2.pop %v286
  %v304 = vmul.f32 %v303, 0.6931472
  %v305 = vlog2.pop %v289
  %v306 = vmul.f32 %v305, 0.6931472
  %v307 = vlog2.pop %v292
  %v308 = vmul.f32 %v307, 0.6931472
  %v309 = vadd.f32 %v223, %v294
  %v310 = vadd.f32 %v226, %v296
  %v311 = vadd.f32 %v229, %v298
  %v312 = vadd.f32 %v232, %v300
  %v313 = vadd.f32 %v235, %v302
  %v314 = vadd.f32 %v238, %v304
  %v315 = vadd.f32 %v241, %v306
  %v316 = vadd.f32 %v244, %v308
  %v317 = vlaneseq
  %v318 = vand.u32 %v317, 127
  %319 = vset.pattern.permute.xlu0 0
  %320 = vperm.xlu0 %319, %v95
  %v321 = vpop.permute.xlu0 %320
  %322 = vset.pattern.permute.xlu0 0
  %323 = vperm.xlu0 %322, %v96
  %v324 = vpop.permute.xlu0 %323
  %325 = vset.pattern.permute.xlu0 0
  %326 = vperm.xlu0 %325, %v97
  %v327 = vpop.permute.xlu0 %326
  %328 = vset.pattern.permute.xlu0 0
  %329 = vperm.xlu0 %328, %v98
  %v330 = vpop.permute.xlu0 %329
  %331 = vset.pattern.permute.xlu0 0
  %332 = vperm.xlu0 %331, %v99
  %v333 = vpop.permute.xlu0 %332
  %334 = vset.pattern.permute.xlu0 0
  %335 = vperm.xlu0 %334, %v100
  %v336 = vpop.permute.xlu0 %335
  %337 = vset.pattern.permute.xlu0 0
  %338 = vperm.xlu0 %337, %v101
  %v339 = vpop.permute.xlu0 %338
  %340 = vset.pattern.permute.xlu0 0
  %341 = vperm.xlu0 %340, %v102
  %v342 = vpop.permute.xlu0 %341
  %vm343 = vcmp.eq.s32.totalorder %v318, %v321
  %vm344 = vcmp.eq.s32.totalorder %v318, %v324
  %vm345 = vcmp.eq.s32.totalorder %v318, %v327
  %vm346 = vcmp.eq.s32.totalorder %v318, %v330
  %vm347 = vcmp.eq.s32.totalorder %v318, %v333
  %vm348 = vcmp.eq.s32.totalorder %v318, %v336
  %vm349 = vcmp.eq.s32.totalorder %v318, %v339
  %vm350 = vcmp.eq.s32.totalorder %v318, %v342
  %v351 = vsel %vm343, %v190, 0.0
  %v352 = vsel %vm344, %v193, 0.0
  %v353 = vsel %vm345, %v198, 0.0
  %v354 = vsel %vm346, %v201, 0.0
  %v355 = vsel %vm347, %v206, 0.0
  %v356 = vsel %vm348, %v209, 0.0
  %v357 = vsel %vm349, %v214, 0.0
  %v358 = vsel %vm350, %v217, 0.0
  %v359 = vsel %vm220, %v351, 0.0
  %360 = vadd.xlane.f32.xlu0 %v359
  %v361 = vpop.xlane.xlu0 %360
  %v362 = vsel %vm220, %v352, 0.0
  %363 = vadd.xlane.f32.xlu0 %v362
  %v364 = vpop.xlane.xlu0 %363
  %v365 = vsel %vm220, %v353, 0.0
  %366 = vadd.xlane.f32.xlu0 %v365
  %v367 = vpop.xlane.xlu0 %366
  %v368 = vsel %vm220, %v354, 0.0
  %369 = vadd.xlane.f32.xlu0 %v368
  %v370 = vpop.xlane.xlu0 %369
  %v371 = vsel %vm220, %v355, 0.0
  %372 = vadd.xlane.f32.xlu0 %v371
  %v373 = vpop.xlane.xlu0 %372
  %v374 = vsel %vm220, %v356, 0.0
  %375 = vadd.xlane.f32.xlu0 %v374
  %v376 = vpop.xlane.xlu0 %375
  %v377 = vsel %vm220, %v357, 0.0
  %378 = vadd.xlane.f32.xlu0 %v377
  %v379 = vpop.xlane.xlu0 %378
  %v380 = vsel %vm220, %v358, 0.0
  %381 = vadd.xlane.f32.xlu0 %v380
  %v382 = vpop.xlane.xlu0 %381
  %vm383 = vcmp.ne.s32.totalorder %v95, 4294967196
  %vm384 = vcmp.ne.s32.totalorder %v96, 4294967196
  %vm385 = vcmp.ne.s32.totalorder %v97, 4294967196
  %vm386 = vcmp.ne.s32.totalorder %v98, 4294967196
  %vm387 = vcmp.ne.s32.totalorder %v99, 4294967196
  %vm388 = vcmp.ne.s32.totalorder %v100, 4294967196
  %vm389 = vcmp.ne.s32.totalorder %v101, 4294967196
  %vm390 = vcmp.ne.s32.totalorder %v102, 4294967196
  %v391 = vsub.f32 %v309, %v361
  %v392 = vsub.f32 %v310, %v364
  %v393 = vsub.f32 %v311, %v367
  %v394 = vsub.f32 %v312, %v370
  %v395 = vsub.f32 %v313, %v373
  %v396 = vsub.f32 %v314, %v376
  %v397 = vsub.f32 %v315, %v379
  %v398 = vsub.f32 %v316, %v382
  %v399 = vsel %vm383, %v391, 0.0
  %v400 = vsel %vm384, %v392, 0.0
  %v401 = vsel %vm385, %v393, 0.0
  %v402 = vsel %vm386, %v394, 0.0
  %v403 = vsel %vm387, %v395, 0.0
  %v404 = vsel %vm388, %v396, 0.0
  %v405 = vsel %vm389, %v397, 0.0
  %v406 = vsel %vm390, %v398, 0.0
  %v407 = vld [vmem:[#allocation2] sm:$0xff]
  %v408 = vld [vmem:[#allocation2 + $0x8] sm:$0xff]
  %v409 = vld [vmem:[#allocation2 + $0x10] sm:$0xff]
  %v410 = vld [vmem:[#allocation2 + $0x18] sm:$0xff]
  %v411 = vld [vmem:[#allocation2 + $0x20] sm:$0xff]
  %v412 = vld [vmem:[#allocation2 + $0x28] sm:$0xff]
  %v413 = vld [vmem:[#allocation2 + $0x30] sm:$0xff]
  %v414 = vld [vmem:[#allocation2 + $0x38] sm:$0xff]
  %v415 = vadd.f32 %v407, %v399
  %v416 = vadd.f32 %v408, %v400
  %v417 = vadd.f32 %v409, %v401
  %v418 = vadd.f32 %v410, %v402
  %v419 = vadd.f32 %v411, %v403
  %v420 = vadd.f32 %v412, %v404
  %v421 = vadd.f32 %v413, %v405
  %v422 = vadd.f32 %v414, %v406
  %vm423 = vcmask 7168
  %424 = vst.msk [vmem:[#allocation2] sm:$0xff] %vm423, %v415
  %425 = vst.msk [vmem:[#allocation2 + $0x8] sm:$0xff] %vm423, %v416
  %426 = vst.msk [vmem:[#allocation2 + $0x10] sm:$0xff] %vm423, %v417
  %427 = vst.msk [vmem:[#allocation2 + $0x18] sm:$0xff] %vm423, %v418
  %428 = vst.msk [vmem:[#allocation2 + $0x20] sm:$0xff] %vm423, %v419
  %429 = vst.msk [vmem:[#allocation2 + $0x28] sm:$0xff] %vm423, %v420
  %430 = vst.msk [vmem:[#allocation2 + $0x30] sm:$0xff] %vm423, %v421
  %431 = vst.msk [vmem:[#allocation2 + $0x38] sm:$0xff] %vm423, %v422
  %v432 = vld [vmem:[#allocation3] sm:$0xff]
  %v433 = vld [vmem:[#allocation3 + $0x8] sm:$0xff]
  %v434 = vld [vmem:[#allocation3 + $0x10] sm:$0xff]
  %v435 = vld [vmem:[#allocation3 + $0x18] sm:$0xff]
  %v436 = vld [vmem:[#allocation3 + $0x20] sm:$0xff]
  %v437 = vld [vmem:[#allocation3 + $0x28] sm:$0xff]
  %v438 = vld [vmem:[#allocation3 + $0x30] sm:$0xff]
  %v439 = vld [vmem:[#allocation3 + $0x38] sm:$0xff]
  %v440 = vsel %vm383, 1, 0
  %v441 = vsel %vm384, 1, 0
  %v442 = vsel %vm385, 1, 0
  %v443 = vsel %vm386, 1, 0
  %v444 = vsel %vm387, 1, 0
  %v445 = vsel %vm388, 1, 0
  %v446 = vsel %vm389, 1, 0
  %v447 = vsel %vm390, 1, 0
  %v448 = vcvt.s32.f32 %v440
  %v449 = vcvt.s32.f32 %v441
  %v450 = vcvt.s32.f32 %v442
  %v451 = vcvt.s32.f32 %v443
  %v452 = vcvt.s32.f32 %v444
  %v453 = vcvt.s32.f32 %v445
  %v454 = vcvt.s32.f32 %v446
  %v455 = vcvt.s32.f32 %v447
  %v456 = vadd.f32 %v432, %v448
  %v457 = vadd.f32 %v433, %v449
  %v458 = vadd.f32 %v434, %v450
  %v459 = vadd.f32 %v435, %v451
  %v460 = vadd.f32 %v436, %v452
  %v461 = vadd.f32 %v437, %v453
  %v462 = vadd.f32 %v438, %v454
  %v463 = vadd.f32 %v439, %v455
  %464 = vst.msk [vmem:[#allocation3] sm:$0xff] %vm423, %v456
  %465 = vst.msk [vmem:[#allocation3 + $0x8] sm:$0xff] %vm423, %v457
  %466 = vst.msk [vmem:[#allocation3 + $0x10] sm:$0xff] %vm423, %v458
  %467 = vst.msk [vmem:[#allocation3 + $0x18] sm:$0xff] %vm423, %v459
  %468 = vst.msk [vmem:[#allocation3 + $0x20] sm:$0xff] %vm423, %v460
  %469 = vst.msk [vmem:[#allocation3 + $0x28] sm:$0xff] %vm423, %v461
  %470 = vst.msk [vmem:[#allocation3 + $0x30] sm:$0xff] %vm423, %v462
  %471 = vst.msk [vmem:[#allocation3 + $0x38] sm:$0xff] %vm423, %v463
  // Predicated region
  $region22: #{_pallas_calc_loss.1} parent=0 // pred_check
    %p472 = pneg %p62
  $region23: #{_pallas_calc_loss.1} parent=0 // pred_check_branch
    %474 = sbr.rel (%p472) target = $region25
  $region24: #{_pallas_calc_loss.1} parent=0 // pred_region
    %v475 = vld [vmem:[#allocation2] sm:$0xff]
    %v476 = vld [vmem:[#allocation2 + $0x8] sm:$0xff]
    %v477 = vld [vmem:[#allocation2 + $0x10] sm:$0xff]
    %v478 = vld [vmem:[#allocation2 + $0x18] sm:$0xff]
    %v479 = vld [vmem:[#allocation2 + $0x20] sm:$0xff]
    %v480 = vld [vmem:[#allocation2 + $0x28] sm:$0xff]
    %v481 = vld [vmem:[#allocation2 + $0x30] sm:$0xff]
    %v482 = vld [vmem:[#allocation2 + $0x38] sm:$0xff]
    %v483 = vsel %vm423, %v475, 0.0
    %v484 = vsel %vm423, %v476, 0.0
    %v485 = vadd.f32 %v483, %v484
    %v486 = vsel %vm423, %v477, 0.0
    %v487 = vadd.f32 %v485, %v486
    %v488 = vsel %vm423, %v478, 0.0
    %v489 = vadd.f32 %v487, %v488
    %v490 = vsel %vm423, %v479, 0.0
    %v491 = vadd.f32 %v489, %v490
    %v492 = vsel %vm423, %v480, 0.0
    %v493 = vadd.f32 %v491, %v492
    %v494 = vsel %vm423, %v481, 0.0
    %v495 = vadd.f32 %v493, %v494
    %v496 = vsel %vm423, %v482, 0.0
    %v497 = vadd.f32 %v495, %v496
    %498 = vadd.xlane.f32.xlu0 %v497
    %v499 = vpop.xlane.xlu0 %498
    %v500 = vrot.slane %v499, 4
    %v501 = vadd.f32 %v499, %v500
    %v502 = vrot.slane %v501, 2
    %v503 = vadd.f32 %v501, %v502
    %v504 = vrot.slane %v503, 1
    %v505 = vadd.f32 %v503, %v504
    %s506 = vtos %v505
    %v507 = vld [vmem:[#allocation3] sm:$0xff]
    %v508 = vld [vmem:[#allocation3 + $0x8] sm:$0xff]
    %v509 = vld [vmem:[#allocation3 + $0x10] sm:$0xff]
    %v510 = vld [vmem:[#allocation3 + $0x18] sm:$0xff]
    %v511 = vld [vmem:[#allocation3 + $0x20] sm:$0xff]
    %v512 = vld [vmem:[#allocation3 + $0x28] sm:$0xff]
    %v513 = vld [vmem:[#allocation3 + $0x30] sm:$0xff]
    %v514 = vld [vmem:[#allocation3 + $0x38] sm:$0xff]
    %v515 = vsel %vm423, %v507, 0.0
    %v516 = vsel %vm423, %v508, 0.0
    %v517 = vadd.f32 %v515, %v516
    %v518 = vsel %vm423, %v509, 0.0
    %v519 = vadd.f32 %v517, %v518
    %v520 = vsel %vm423, %v510, 0.0
    %v521 = vadd.f32 %v519, %v520
    %v522 = vsel %vm423, %v511, 0.0
    %v523 = vadd.f32 %v521, %v522
    %v524 = vsel %vm423, %v512, 0.0
    %v525 = vadd.f32 %v523, %v524
    %v526 = vsel %vm423, %v513, 0.0
    %v527 = vadd.f32 %v525, %v526
    %v528 = vsel %vm423, %v514, 0.0
    %v529 = vadd.f32 %v527, %v528
    %530 = vadd.xlane.f32.xlu0 %v529
    %v531 = vpop.xlane.xlu0 %530
    %v532 = vrot.slane %v531, 4
    %v533 = vadd.f32 %v531, %v532
    %v534 = vrot.slane %v533, 2
    %v535 = vadd.f32 %v533, %v534
    %v536 = vrot.slane %v535, 1
    %v537 = vadd.f32 %v535, %v536
    %s538 = vtos %v537
    %v539 = vlaneseq
    %v540 = vshrl.u32 %v539, 7
    %vm541 = vcmp.eq.s32.totalorder %v540, 0
    %vm542 = vcmp.eq.s32.totalorder %v318, 0
    %vm543 = vmand %vm541, %vm542
    %v544 = vstv %s506
    %v545 = vsel %vm543, %v544, 0.0
    %vm546 = vcmp.eq.s32.totalorder %v318, 1
    %vm547 = vmand %vm541, %vm546
    %v548 = vstv %s538
    %v549 = vsel %vm547, %v548, 0.0
    %v550 = vadd.f32 %v545, %v549
    %551 = vst [vmem:[%s4] sm:$0xff] %v550
  $region25: #{_pallas_calc_loss.1} parent=0 // pred_fallthru
    _
  // Predicated region
  $region26: #{_pallas_calc_loss.1} parent=0 // pred_check
    _
  $region27: #{_pallas_calc_loss.1} parent=0 // pred_check_branch
    %553 = sbr.rel (0) target = $region29
  $region28: #{_pallas_calc_loss.1} parent=0 // pred_region
    _
  $region29: #{_pallas_calc_loss.1} parent=0 // pred_fallthru
    _
  // Predicated region
  $region30: #{_pallas_calc_loss.1} parent=0 // pred_check
    _
  $region31: #{_pallas_calc_loss.1} parent=0 // pred_check_branch
    %555 = sbr.rel (0) target = $region33
  $region32: #{_pallas_calc_loss.1} parent=0 // pred_region
    _
  $region33: #{_pallas_calc_loss.1} parent=0 // pred_fallthru
    _

</llo_original>
